<compile_context>
chip_gen: v7x
topology: tpu7x:2x2x1
jax: 0.10.0
libtpu: 0.0.40
codegen_flags: <defaults>
</compile_context>

<pallas_src>
import math

import jax
import jax.numpy as jnp
from jax.experimental import pallas as pl
from jax.experimental.pallas import tpu as pltpu

_LANE = 128
_SUBLANE = 8

_BUDGET_CACHE = None


def _per_buffer_elem_budget():
    """f32-element budget per pipelined block buffer, chosen per TPU generation."""
    global _BUDGET_CACHE
    if _BUDGET_CACHE is None:
        budget = 512 * 1024  # ~2 MiB/buffer: ~12 MiB pipelined, safe for v5e's 16 MiB scoped VMEM
        try:
            vmem = int(getattr(pltpu.get_tpu_info(), "vmem_capacity_bytes", 0))
            if 0 < vmem <= (64 << 20):
                # v7x-class: 64 MiB physical VMEM, ~3.2 TB/s HBM -> bigger blocks amortize
                # the ~0.35 us per-grid-step overhead; ~24 MiB pipelined < 32 MiB scoped.
                budget = 1024 * 1024  # ~4 MiB/buffer
        except Exception:
            pass
        _BUDGET_CACHE = budget
    return _BUDGET_CACHE


def _round_up(v, m):
    return ((v + m - 1) // m) * m


def _largest_lane_divisor(r, cap):
    """Largest multiple of 128 that divides r and is <= cap (cap >= 128, r % 128 == 0)."""
    t = min(r, cap) // _LANE * _LANE
    while t > _LANE:
        if r % t == 0:
            return t
        t -= _LANE
    return _LANE


def _atan2_kernel_2in(s_ref, c_ref, o_ref):
    # Compute in f32 regardless of input dtype (no-op cast for f32).
    s = s_ref[...].astype(jnp.float32)
    c = c_ref[...].astype(jnp.float32)
    o_ref[...] = jnp.arctan2(s, c).astype(o_ref.dtype)


def _make_atan2_kernel_1in(r):
    # Single input block holds [sin_0..sin_{R-1} | cos_0..cos_{R-1}] per row; the split
    # point R is a multiple of 128, so the static ref slices are lane-tile aligned (free).
    def kernel(x_ref, o_ref):
        s = x_ref[:, :r].astype(jnp.float32)
        c = x_ref[:, r:].astype(jnp.float32)
        o_ref[...] = jnp.arctan2(s, c).astype(o_ref.dtype)
    return kernel


def _fast_path(x, b, r, out_shape):
    """R is a multiple of 128: zero-copy (B, 2R) view, lane-dense blocks."""
    itemsize = jnp.dtype(x.dtype).itemsize
    budget = _per_buffer_elem_budget()
    total_bytes = b * 2 * r * itemsize

    x2 = x.reshape(b, 2 * r)  # free reshape: row b = [sin half | cos half]

    # Lane tile first: largest multiple-of-128 divisor of R within the budget.
    max_tr = max(_LANE, min(r, budget // _SUBLANE) // _LANE * _LANE)
    tr = _largest_lane_divisor(r, max_tr)
    # Batch tile fills the rest of the budget (full extent allowed even if B % 8 != 0).
    tb = b if (budget // tr) >= b else max(_SUBLANE, (budget // tr) // _SUBLANE * _SUBLANE)

    # v7x has 2 TensorCores sharded via "parallel" axes: guarantee >= 2 grid points for
    # anything bigger than ~2 MiB (no effect on v5e/v6e, which have a single TC).
    if pl.cdiv(b, tb) * (r // tr) == 1 and total_bytes > (2 << 20):
        if tb >= 2 * _SUBLANE:
            tb = max(_SUBLANE, (tb // 2) // _SUBLANE * _SUBLANE)
        else:
            t2 = _largest_lane_divisor(r, max(tr // 2, _LANE))
            if t2 < tr:
                tr = t2

    cost = pl.CostEstimate(flops=25 * b * r,
                           transcendentals=b * r,
                           bytes_accessed=3 * b * r * itemsize)

    if tr == r:
        # -------- single-input-spec variant: one DMA stream for both halves --------
        footprint = 6 * tb * r * itemsize  # (2 bufs * 2R + 2 bufs * R) * tb
        out = pl.pallas_call(
            _make_atan2_kernel_1in(r),
            out_shape=jax.ShapeDtypeStruct((b, r), x.dtype),
            grid=(pl.cdiv(b, tb),),
            in_specs=[pl.BlockSpec((tb, 2 * r), lambda i: (i, 0))],
            out_specs=pl.BlockSpec((tb, r), lambda i: (i, 0)),
            compiler_params=pltpu.CompilerParams(
                dimension_semantics=("parallel",),
                vmem_limit_bytes=max(footprint + (2 << 20), 16 << 20)),
            cost_estimate=cost,
        )(x2)
    else:
        # -------- two-spec variant: cos spec offset by R (in whole blocks) --------
        cos_off = r // tr  # valid because tr divides r exactly
        footprint = 6 * tb * tr * itemsize
        out = pl.pallas_call(
            _atan2_kernel_2in,
            out_shape=jax.ShapeDtypeStruct((b, r), x.dtype),
            grid=(pl.cdiv(b, tb), r // tr),
            in_specs=[
                pl.BlockSpec((tb, tr), lambda i, j: (i, j)),            # sin half
                pl.BlockSpec((tb, tr), lambda i, j: (i, j + cos_off)),  # cos half
            ],
            out_specs=pl.BlockSpec((tb, tr), lambda i, j: (i, j)),
            compiler_params=pltpu.CompilerParams(
                dimension_semantics=("parallel", "parallel"),
                vmem_limit_bytes=max(footprint + (2 << 20), 16 << 20)),
            cost_estimate=cost,
        )(x2, x2)
    return out.reshape(out_shape)


def _fallback_path(x, b, r, out_shape):
    """R not lane-aligned: flatten to a wide (rows, 1024) layout, pad, run dense tiles."""
    m = b * r
    itemsize = jnp.dtype(x.dtype).itemsize

    # Tiny problems (e.g. plain (B, 2)): pallas_call + pipeline setup dwarfs the work.
    if m < 8 * 1024:
        return jnp.arctan2(x[:, 0], x[:, 1])

    budget = _per_buffer_elem_budget()
    w = 1024                      # wide lane dim -> few, dense grid steps
    m_pad = _round_up(m, _SUBLANE * w)

    # TODO(synk): this moveaxis is one extra HBM read+write pass; fusing the gather into
    # the kernel would need element-offset DMAs for the non-lane-aligned sin/cos split.
    x2 = jnp.moveaxis(x.reshape(b, 2, r), 1, 0).reshape(2, m)
    if m_pad != m:
        x2 = jnp.pad(x2, ((0, 0), (0, m_pad - m)))
    rows = m_pad // w             # multiple of 8
    sin2 = x2[0].reshape(rows, w)
    cos2 = x2[1].reshape(rows, w)

    ts = min(rows, max(_SUBLANE, (budget // w) // _SUBLANE * _SUBLANE))
    footprint = 6 * ts * w * itemsize
    cost = pl.CostEstimate(flops=25 * m,
                           transcendentals=m,
                           bytes_accessed=3 * m * itemsize)

    out = pl.pallas_call(
        _atan2_kernel_2in,
        out_shape=jax.ShapeDtypeStruct((rows, w), x.dtype),
        grid=(pl.cdiv(rows, ts),),
        in_specs=[
            pl.BlockSpec((ts, w), lambda i: (i, 0)),
            pl.BlockSpec((ts, w), lambda i: (i, 0)),
        ],
        out_specs=pl.BlockSpec((ts, w), lambda i: (i, 0)),
        compiler_params=pltpu.CompilerParams(
            dimension_semantics=("parallel",),
            vmem_limit_bytes=max(footprint + (2 << 20), 16 << 20)),
        cost_estimate=cost,
    )(sin2, cos2)
    return out.reshape(m_pad)[:m].reshape(out_shape)


def sincos_to_angle(x):
    """Exact equivalent of torch.atan2(x[:, 0], x[:, 1]) for x of shape (B, 2, *rest)."""
    assert x.ndim >= 2 and x.shape[1] == 2, "expected channel axis 1 of size 2"
    b = x.shape[0]
    rest = x.shape[2:]
    out_shape = (b,) + rest
    r = math.prod(rest)  # elements per (batch, channel); 1 if rest is empty

    if r % _LANE == 0 and r > 0:
        return _fast_path(x, b, r, out_shape)
    return _fallback_path(x, b, r, out_shape)


if __name__ == "__main__":
    key = jax.random.PRNGKey(0)
    k0, k1, k2 = jax.random.split(key, 3)

    # Fast path: (B, 2, H, W) with lane-aligned R = H*W = 256 (single-input-spec variant).
    x = jax.random.normal(k0, (2, 2, 16, 16), dtype=jnp.float32)
    angle = sincos_to_angle(x)
    jax.block_until_ready(angle)
    ref = jnp.arctan2(x[:, 0], x[:, 1])
    assert angle.shape == ref.shape
    assert jnp.allclose(angle, ref, atol=1e-3, rtol=1e-3)

    # Fallback Pallas path: non-lane-aligned R, large enough to beat the pure-XLA shortcut.
    x_ragged = jax.random.normal(k1, (16, 2, 30, 30), dtype=jnp.float32)
    angle_r = sincos_to_angle(x_ragged)
    jax.block_until_ready(angle_r)
    ref_r = jnp.arctan2(x_ragged[:, 0], x_ragged[:, 1])
    assert angle_r.shape == ref_r.shape
    assert jnp.allclose(angle_r, ref_r, atol=1e-3, rtol=1e-3)

    # Tiny (B, 2): handled by the pure-XLA shortcut (Pallas overhead would dominate).
    x_small = jax.random.normal(k2, (8, 2), dtype=jnp.float32)
    angle_s = sincos_to_angle(x_small)
    jax.block_until_ready(angle_s)
    ref_s = jnp.arctan2(x_small[:, 0], x_small[:, 1])
    assert angle_s.shape == ref_s.shape
    assert jnp.allclose(angle_s, ref_s, atol=1e-3, rtol=1e-3)

    print("KERNEL_OK")
</pallas_src>

<mosaic_0001>
module attributes {stable_mosaic.version = 11 : i64} {
  func.func @kernel(%arg0: i32, %arg1: memref<2x512xf32, #tpu.memory_space<vmem>>, %arg2: memref<2x256xf32, #tpu.memory_space<vmem>>) attributes {dimension_semantics = [#tpu.dimension_semantics<parallel>], iteration_bounds = array<i64: 1>, scalar_prefetch = 0 : i64, scratch_operands = 0 : i64, tpu.core_type = #tpu.core_type<tc>, window_params = [{transform_indices = @transform_0, window_bounds = array<i64: 2, 512>}, {transform_indices = @transform_1, window_bounds = array<i64: 2, 256>}]} {
    %c0 = arith.constant 0 : index
    %c0_0 = arith.constant 0 : index
    %0 = vector.load %arg1[%c0, %c0_0] : memref<2x512xf32, #tpu.memory_space<vmem>>, vector<2x256xf32>
    %c0_1 = arith.constant 0 : index
    %c256 = arith.constant 256 : index
    %1 = vector.load %arg1[%c0_1, %c256] : memref<2x512xf32, #tpu.memory_space<vmem>>, vector<2x256xf32>
    %2 = math.atan2 %0, %1 : vector<2x256xf32>
    %c0_2 = arith.constant 0 : index
    %c0_3 = arith.constant 0 : index
    %3 = vector.load %arg2[%c0_2, %c0_3] : memref<2x256xf32, #tpu.memory_space<vmem>>, vector<2x256xf32>
    tpu.vector_store %arg2[%c0_2, %c0_3], %2 {strides = array<i32>} : memref<2x256xf32, #tpu.memory_space<vmem>>, vector<2x256xf32>,
    return
  }
  func.func @transform_0(%arg0: i32) -> (i32, i32) {
    %c0_i32 = arith.constant 0 : i32
    %c0_i32_0 = arith.constant 0 : i32
    return %arg0, %c0_i32 : i32, i32
  }
  func.func @transform_1(%arg0: i32) -> (i32, i32) {
    %c0_i32 = arith.constant 0 : i32
    %c0_i32_0 = arith.constant 0 : i32
    return %arg0, %c0_i32 : i32, i32
  }
}

</mosaic_0001>

<llo_original>
// kernel: tpu_custom_call.1
$region0: #{tpu_custom_call.1}
  #allocation0 [shape = 'u32[]', space=smem, size = 0x4, offset = 0x4, fixed_abs, tag = 'smem constant byte address 0x4 - core index']
  #allocation1 [shape = 'u32[144,128]{1,0:T(1,128)}', space=vmem, size = 0x12000, scoped, tag = 'internal scratch']
  %s0 = inlined_call_operand.hbm [shape: f32[2,512], index: 0, kind: input, shape index: {}]
  %s1 = inlined_call_operand.hbm [shape: f32[2,256], index: 1, kind: output, shape index: {}]
  %s2 = sld [smem:[#allocation0]]
  $region18: #{tpu_custom_call.1} parent=0
    _
  %s4 = ssub.s32 1, %s2
  %s5 = scalar_select 0, %s4, %s2
  $region1: #{tpu_custom_call.1} parent=0
    #allocation2 [shape = 'u8[4096]{0}', space=vmem, size = 0x1000, scoped, tag = 'input window, operand 0, single buffered']
    #allocation3 [shape = 's32[1]{0}', space=sflag, size = 0x4, scoped, tag = 'scoped memory for tpu_custom_call.1']
    #allocation4 [shape = 's32[1]{0}', space=sflag, size = 0x4, scoped, tag = 'scoped memory for tpu_custom_call.1']
    #allocation5 [shape = 'u8[2048]{0}', space=vmem, size = 0x800, scoped, tag = 'output window, operand 0, single buffered']
    %6 = vsyncpa [#allocation3], 0
    %7 = vsyncpa [#allocation4], 0
    // Predicated region
    $region2: #{tpu_custom_call.1} parent=1 // pred_check
      _
    $region3: #{tpu_custom_call.1} parent=1 // pred_check_branch
      %9 = sbr.rel (0) target = $region5
    $region4: #{tpu_custom_call.1} parent=1 // pred_region
      %s11 = ssub.s32 128, 128
      %12 = vsyncadd [#allocation3], %s11
      %s14 = sshll.u32 [#allocation2], 4
      %s15 = int_to_ptr.vmem [resolvable:$true] %s14
      %17 = dma.hbm_to_vmem [thread:$0]  %s0, 128, %s15, [#allocation3]
    $region5: #{tpu_custom_call.1} parent=1 // pred_fallthru
      _
    // Predicated region
    $region6: #{tpu_custom_call.1} parent=1 // pred_check
      _
    $region7: #{tpu_custom_call.1} parent=1 // pred_check_branch
      %19 = sbr.rel (0) target = $region9
    $region8: #{tpu_custom_call.1} parent=1 // pred_region
      %20 = dma.done [#allocation3], 128
    $region9: #{tpu_custom_call.1} parent=1 // pred_fallthru
      _
    %v21 = vld [vmem:[#allocation2] sm:$0xf]
    %v22 = vld [vmem:[#allocation2 + $0x4] sm:$0xf]
    %v23 = vand.u32 2147483647, %v22
    %v24 = vand.u32 2147483647, %v21
    %v25 = vmin.f32 %v23, %v24
    %v26 = vmax.f32 %v23, %v24
    %v27 = vrcp.pop %v26
    %v28 = vmul.f32 %v25, %v27
    %v29 = vmul.f32 %v28, %v28
    %v30 = vmul.f32 0.002785687, %v29
    %v31 = vadd.f32 %v30, -0.015866
    %v32 = vmul.f32 %v31, %v29
    %v33 = vadd.f32 %v32, 0.04247222
    %v34 = vmul.f32 %v33, %v29
    %v35 = vadd.f32 %v34, -0.074975304
    %v36 = vmul.f32 %v35, %v29
    %v37 = vadd.f32 %v36, 0.1064488
    %v38 = vmul.f32 %v37, %v29
    %v39 = vadd.f32 %v38, -0.14207031
    %v40 = vmul.f32 %v39, %v29
    %v41 = vadd.f32 %v40, 0.19993454
    %v42 = vmul.f32 %v41, %v29
    %v43 = vadd.f32 %v42, -0.33333147
    %v44 = vmul.f32 %v43, %v29
    %v45 = vmul.f32 %v44, %v28
    %v46 = vadd.f32 %v45, %v28
    %vm47 = vcmp.gt.f32.partialorder %v24, %v23
    %v48 = vsub.f32 1.5707964, %v46
    %v49 = vsel %vm47, %v48, %v46
    %vm50 = vcmp.lt.f32.partialorder %v22, 0.0
    %v51 = vsub.f32 3.1415927, %v49
    %v52 = vsel %vm50, %v51, %v49
    %vm53 = vcmp.lt.s32.totalorder %v22, 0
    %v54 = vsel %vm53, 3.1415927, 0.0
    %vm55 = vcmp.eq.f32.partialorder %v21, 0.0
    %v56 = vsel %vm55, %v54, %v52
    %vm57 = vcmp.ne.f32.partialorder %v22, %v22
    %vm58 = vcmp.ne.f32.partialorder %v21, %v21
    %vm59 = vmor %vm57, %vm58
    %v60 = vsel %vm59, nan, %v56
    %vm61 = vcmp.lt.f32.partialorder %v22, 0.0
    %v62 = vsel %vm61, 2.3561945, 0.7853982
    %vm63 = vcmp.eq.s32.totalorder %v23, inf
    %vm64 = vcmp.eq.s32.totalorder %v24, inf
    %vm65 = vmand %vm63, %vm64
    %v66 = vsel %vm65, %v62, %v60
    %v67 = vand.u32 2147483647, %v66
    %v68 = vand.u32 %v21, 2147483648
    %v69 = vor.u32 %v67, %v68
    %70 = vst [vmem:[#allocation5] sm:$0xf] %v69
    // Predicated region
    $region10: #{tpu_custom_call.1} parent=1 // pred_check
      _
    $region11: #{tpu_custom_call.1} parent=1 // pred_check_branch
      %72 = sbr.rel (0) target = $region13
    $region12: #{tpu_custom_call.1} parent=1 // pred_region
      %s74 = ssub.s32 64, 64
      %75 = vsyncadd [#allocation4], %s74
      %s77 = sshll.u32 [#allocation5], 4
      %s78 = int_to_ptr.vmem [resolvable:$true] %s77
      %80 = dma.vmem_to_hbm [thread:$0]  %s78, 64, %s1, [#allocation4]
    $region13: #{tpu_custom_call.1} parent=1 // pred_fallthru
      _
    // Predicated region
    $region14: #{tpu_custom_call.1} parent=1 // pred_check
      _
    $region15: #{tpu_custom_call.1} parent=1 // pred_check_branch
      %82 = sbr.rel (0) target = $region17
    $region16: #{tpu_custom_call.1} parent=1 // pred_region
      %83 = dma.done [#allocation4], 64
    $region17: #{tpu_custom_call.1} parent=1 // pred_fallthru
      _
    %84 = vsyncpa [#allocation3], 1
    %85 = vsyncpa [#allocation4], 1

</llo_original>
